<compile_context>
chip_gen: v7x
topology: tpu7x:2x2x1
jax: 0.10.0
libtpu: 0.0.40
codegen_flags: <defaults>
</compile_context>

<pallas_src>
import jax
import jax.numpy as jnp
from jax.experimental import pallas as pl
from jax.experimental.pallas import tpu as pltpu

# ----------------------------- config (small) -------------------------------
D_MODEL = 128      # small stand-in for cfg.d_model=768 (keeps lane-dense 128)
N_CTX = 64         # small stand-in for cfg.n_ctx=1024
INIT_RANGE = 0.02  # cfg.init_range
BATCH = 2
SEQ = 16


def pos_embed_kernel(wpos_ref, out_ref):
    # wpos_ref: (SEQ, D_MODEL) window of W_pos (rows 0..SEQ-1), resident in VMEM
    # out_ref : (1, SEQ, D_MODEL) output slab for the current batch element
    out_ref[0] = wpos_ref[...]


def pos_embed(tokens, W_pos):
    """Pallas equivalent of PosEmbed.forward(tokens).

    Only tokens.shape is used (exactly as in the PyTorch module); token values
    never touch the kernel.  Returns W_pos[:S] broadcast to (B, S, d_model).
    """
    B, S = tokens.shape
    n_ctx, D = W_pos.shape
    assert S <= n_ctx, "sequence longer than n_ctx"
    # BlockSpec (8,128) rule: last two dims of a block must divide (8,128) or
    # equal the full array dims.  D is the full last dim of W_pos; the windowed
    # read over rows needs S % 8 == 0 (or S == n_ctx).
    assert (S % 8 == 0) or (S == n_ctx), "seq must be a multiple of 8 (or == n_ctx)"

    return pl.pallas_call(
        pos_embed_kernel,
        out_shape=jax.ShapeDtypeStruct((B, S, D), W_pos.dtype),
        grid_spec=pltpu.PrefetchScalarGridSpec(
            num_scalar_prefetch=0,
            grid=(B,),
            in_specs=[
                # Constant block index -> (S, D) window of W_pos fetched once,
                # reused for every batch element (no per-step re-DMA).
                pl.BlockSpec((S, D), lambda b: (0, 0)),
            ],
            out_specs=pl.BlockSpec((1, S, D), lambda b: (b, 0, 0)),
        ),
        compiler_params=pltpu.CompilerParams(
            dimension_semantics=("parallel",)),  # v7x: one batch slab per TC
    )(W_pos)


def make_params(key):
    # nn.init.normal_(W_pos, std=cfg.init_range)
    return {
        "W_pos": INIT_RANGE * jax.random.normal(key, (N_CTX, D_MODEL), jnp.float32),
    }


# ------------------------- pure-JAX reference ------------------------------
def reference_pos_embed(tokens, W_pos):
    B, S = tokens.shape
    return jnp.broadcast_to(W_pos[:S][None, :, :], (B, S, W_pos.shape[1]))


if __name__ == "__main__":
    key = jax.random.PRNGKey(0)
    pkey, tkey = jax.random.split(key)
    params = make_params(pkey)

    # tokens: only the shape matters for PosEmbed, values are arbitrary ids.
    tokens = jax.random.randint(tkey, (BATCH, SEQ), 0, 1000, dtype=jnp.int32)

    # TODO(synk): cfg.debug host-side shape prints from the PyTorch forward are
    # intentionally omitted (they are not tensor ops).
    out = jax.jit(pos_embed)(tokens, params["W_pos"])
    out = jax.block_until_ready(out)

    ref = reference_pos_embed(tokens, params["W_pos"])
    assert out.shape == (BATCH, SEQ, D_MODEL)
    assert jnp.array_equal(out, ref), float(jnp.max(jnp.abs(out - ref)))

    print("KERNEL_OK")
</pallas_src>

<mosaic_0001>
module attributes {stable_mosaic.version = 11 : i64} {
  func.func @pos_embed_kernel(%arg0: i32, %arg1: memref<16x128xf32, #tpu.memory_space<vmem>>, %arg2: memref<1x16x128xf32, #tpu.memory_space<vmem>>) attributes {dimension_semantics = [#tpu.dimension_semantics<parallel>], iteration_bounds = array<i64: 2>, scalar_prefetch = 0 : i64, scratch_operands = 0 : i64, tpu.core_type = #tpu.core_type<tc>, window_params = [{transform_indices = @transform_0, window_bounds = array<i64: 16, 128>}, {transform_indices = @transform_1, window_bounds = array<i64: 1, 16, 128>}]} {
    %c0 = arith.constant 0 : index
    %c0_0 = arith.constant 0 : index
    %0 = vector.load %arg1[%c0, %c0_0] : memref<16x128xf32, #tpu.memory_space<vmem>>, vector<16x128xf32>
    %c0_1 = arith.constant 0 : index
    %c0_2 = arith.constant 0 : index
    %c0_3 = arith.constant 0 : index
    %1 = vector.load %arg2[%c0_1, %c0_2, %c0_3] : memref<1x16x128xf32, #tpu.memory_space<vmem>>, vector<1x16x128xf32>
    %2 = vector.shape_cast %1 : vector<1x16x128xf32> to vector<16x128xf32>
    %3 = vector.shape_cast %0 : vector<16x128xf32> to vector<1x16x128xf32>
    tpu.vector_store %arg2[%c0_1, %c0_2, %c0_3], %3 {strides = array<i32>} : memref<1x16x128xf32, #tpu.memory_space<vmem>>, vector<1x16x128xf32>,
    return
  }
  func.func @transform_0(%arg0: i32) -> (i32, i32) {
    %c0_i32 = arith.constant 0 : i32
    %c0_i32_0 = arith.constant 0 : i32
    %c0_i32_1 = arith.constant 0 : i32
    return %c0_i32, %c0_i32_0 : i32, i32
  }
  func.func @transform_1(%arg0: i32) -> (i32, i32, i32) {
    %c0_i32 = arith.constant 0 : i32
    %c0_i32_0 = arith.constant 0 : i32
    %c0_i32_1 = arith.constant 0 : i32
    return %arg0, %c0_i32, %c0_i32_0 : i32, i32, i32
  }
}

</mosaic_0001>

<llo_original>
// kernel: pos_embed.1
$region0: #{pos_embed.1}
  #allocation0 [shape = 'u32[]', space=smem, size = 0x4, offset = 0x4, fixed_abs, tag = 'smem constant byte address 0x4 - core index']
  #allocation1 [shape = 'u32[144,128]{1,0:T(1,128)}', space=vmem, size = 0x12000, scoped, tag = 'internal scratch']
  %s0 = inlined_call_operand.hbm [shape: f32[64,128], index: 0, kind: input, shape index: {}]
  %s1 = inlined_call_operand.hbm [shape: f32[2,16,128], index: 1, kind: output, shape index: {}]
  %s2 = sld [smem:[#allocation0]]
  $region41: #{pos_embed.1} parent=0
    _
  %s4 = ssub.s32 1, %s2
  %s5 = scalar_select 0, %s4, %s2
  $region1: #{pos_embed.1} parent=0
    #allocation2 [shape = 'u8[8192]{0}', space=vmem, size = 0x2000, scoped, tag = 'input window, operand 0, single buffered']
    #allocation3 [shape = 's32[2]{0}', space=sflag, size = 0x8, scoped, tag = 'scoped memory for pos_embed.1']
    #allocation4 [shape = 's32[2]{0}', space=sflag, size = 0x8, scoped, tag = 'scoped memory for pos_embed.1']
    #allocation5 [shape = 'u8[16384]{0}', space=vmem, size = 0x4000, scoped, tag = 'output window, operand 0']
    %6 = vsyncpa [#allocation3], 0
    %7 = vsyncpa [#allocation4], 0
    %s8 = scalar_lea.sflag [#allocation4], 1
    %9 = vsyncpa %s8, 0
    loop: start=0, step=1, limit=4
    $region2: #{pos_embed.1} parent=1 // loop_pre_header
      _
    $region3: #{pos_embed.1} parent=1 // loop_header
      %s11 = sphi 0, %s15
      %p12 = scmp.ge.s32.totalorder %s11, 4
      %s19 = sphi 0, %s19
      %s21 = sphi 0, %s19
      %s22 = sphi 0, %s21
      %s36 = sphi 0, %s22
      %s42 = sphi 0, %s44
      %s45 = sphi 0, %s42
      %s46 = sphi 0, %s45
      %s62 = sphi 0, %s46
    $region4: #{pos_embed.1} parent=1 // loop_header_branch
      %14 = sbr.rel (%p12) target = $region8
    $region5: #{pos_embed.1} parent=1 // loop_body
      %s16 = ssub.s32 %s11, 1
      %s17 = ssub.s32 %s11, 2
      %s18 = sadd.s32 %s11, 1
      %s20 = sadd.s32 %s19, 1
      %p23 = scmp.eq.s32.totalorder %s11, 1
      %p24 = scmp.ne.s32.totalorder %s19, %s21
      %p25 = scmp.eq.s32.totalorder %s11, 0
      %p26 = por %p24, %p25
      %p27 = scmp.ne.s32.totalorder %s19, %s21
      %p28 = scmp.eq.s32.totalorder %s16, 1
      %p29 = por %p27, %p28
      %p30 = scmp.ne.s32.totalorder %s21, %s22
      %p31 = scmp.eq.s32.totalorder %s16, 0
      %p32 = por %p30, %p31
      %p33 = scmp.ne.s32.totalorder %s21, %s22
      %p34 = scmp.eq.s32.totalorder %s17, 1
      %p35 = por %p33, %p34
      %p37 = scmp.ne.s32.totalorder %s22, %s36
      %p38 = scmp.eq.s32.totalorder %s17, 0
      %p39 = por %p37, %p38
      %s40 = ssub.s32 %s11, %s18
      %p41 = scmp.eq.s32.totalorder %s40, 0
      %s43 = sadd.s32 %s42, 1
      %s44 = scalar_select %p41, %s42, %s43
      %p47 = pneg %p41
      %p48 = scmp.eq.s32.totalorder %s11, 1
      %p49 = por %p47, %p48
      %p50 = scmp.ne.s32.totalorder %s42, %s45
      %p51 = scmp.eq.s32.totalorder %s11, 0
      %p52 = por %p50, %p51
      %p53 = scmp.ne.s32.totalorder %s42, %s45
      %p54 = scmp.eq.s32.totalorder %s16, 1
      %p55 = por %p53, %p54
      %p56 = scmp.ne.s32.totalorder %s45, %s46
      %p57 = scmp.eq.s32.totalorder %s16, 0
      %p58 = por %p56, %p57
      %p59 = scmp.ne.s32.totalorder %s45, %s46
      %p60 = scmp.eq.s32.totalorder %s17, 1
      %p61 = por %p59, %p60
      %p63 = scmp.ne.s32.totalorder %s46, %s62
      %p64 = scmp.eq.s32.totalorder %s17, 0
      %p65 = por %p63, %p64
      %p66 = scmp.le.s32.totalorder 1, %s11
      %p67 = scmp.lt.s32.totalorder %s11, 3
      %p68 = pnand %p66, %p67
      %p69 = pneg %p68
      // Predicated region
      $region9: #{pos_embed.1} parent=5 // pred_check
        _
      $region10: #{pos_embed.1} parent=5 // pred_check_branch
        %71 = sbr.rel (%p68) target = $region12
      $region11: #{pos_embed.1} parent=5 // pred_region
        %s72 = ssub.s32 %s11, 1
        // Predicated region
        $region13: #{pos_embed.1} parent=11 // pred_check
          %p73 = pneg %p32
        $region14: #{pos_embed.1} parent=11 // pred_check_branch
          %75 = sbr.rel (%p73) target = $region16
        $region15: #{pos_embed.1} parent=11 // pred_region
          %s77 = ssub.s32 256, 256
          %78 = vsyncadd [#allocation3], %s77
          %s79 = sshll.u32 [#allocation2], 4
          %s80 = int_to_ptr.vmem [resolvable:$true] %s79
          %85 = dma.hbm_to_vmem [thread:$0]  %s0, 256, %s80, [#allocation3], 128, 128, 8
        $region16: #{pos_embed.1} parent=11 // pred_fallthru
          _
      $region12: #{pos_embed.1} parent=5 // pred_fallthru
        _
      %p86 = scmp.lt.s32.totalorder %s11, 2
      // Predicated region
      $region17: #{pos_embed.1} parent=5 // pred_check
        %p87 = pneg %p86
      $region18: #{pos_embed.1} parent=5 // pred_check_branch
        %89 = sbr.rel (%p87) target = $region20
      $region19: #{pos_embed.1} parent=5 // pred_region
        _
      $region20: #{pos_embed.1} parent=5 // pred_fallthru
        _
      %p90 = scmp.le.s32.totalorder 1, %s11
      %p91 = scmp.lt.s32.totalorder %s11, 3
      %p92 = pnand %p90, %p91
      %p93 = pneg %p92
      // Predicated region
      $region21: #{pos_embed.1} parent=5 // pred_check
        _
      $region22: #{pos_embed.1} parent=5 // pred_check_branch
        %95 = sbr.rel (%p92) target = $region24
      $region23: #{pos_embed.1} parent=5 // pred_region
        %s96 = ssub.s32 %s11, 1
        // Predicated region
        $region25: #{pos_embed.1} parent=23 // pred_check
          %p97 = pneg %p32
        $region26: #{pos_embed.1} parent=23 // pred_check_branch
          %99 = sbr.rel (%p97) target = $region28
        $region27: #{pos_embed.1} parent=23 // pred_region
          %100 = dma.done [#allocation3], 256
        $region28: #{pos_embed.1} parent=23 // pred_fallthru
          _
        %p101 = pneg %p32
        %p102 = pneg %p29
        %p103 = pneg %p58
        %p104 = pneg %p55
        %s105 = sand.u32 %s45, 1
        %s106 = scalar_lea.sflag [#allocation4], %s105
        %s107 = sand.u32 %s45, 1
        %s108 = smul.addr %s107, 16
        %s109 = scalar_lea.vmem [#allocation5], %s108
        %v110 = vld [vmem:[#allocation2] sm:$0xff]
        %v111 = vld [vmem:[#allocation2 + $0x8] sm:$0xff]
        %112 = vst [vmem:[%s109] sm:$0xff] %v110
        %113 = vst [vmem:[%s109 + $0x8] sm:$0xff] %v111
        %s114 = sand.u32 %s45, 1
        %s115 = scalar_lea.sflag [#allocation4], %s114
        %s116 = sand.u32 %s45, 1
        %s117 = smul.addr %s116, 16
        %s118 = scalar_lea.vmem [#allocation5], %s117
        // Predicated region
        $region29: #{pos_embed.1} parent=23 // pred_check
          %p119 = pneg %p55
        $region30: #{pos_embed.1} parent=23 // pred_check_branch
          %121 = sbr.rel (%p119) target = $region32
        $region31: #{pos_embed.1} parent=23 // pred_region
          %s123 = ssub.s32 256, 256
          %124 = vsyncadd %s115, %s123
          %s125 = smul.addr %s16, 2
          %s126 = smul.addr %s125, 128
          %s127 = scalar_lea.hbm %s1, %s126
          %s128 = sshll.u32 %s118, 4
          %s129 = int_to_ptr.vmem [resolvable:$true] %s128
          %134 = dma.vmem_to_hbm [thread:$0]  %s129, 256, %s127, %s115, 128, 128, 8
        $region32: #{pos_embed.1} parent=23 // pred_fallthru
          _
      $region24: #{pos_embed.1} parent=5 // pred_fallthru
        _
      %p135 = scmp.le.s32.totalorder 2, %s11
      // Predicated region
      $region33: #{pos_embed.1} parent=5 // pred_check
        %p136 = pneg %p135
      $region34: #{pos_embed.1} parent=5 // pred_check_branch
        %138 = sbr.rel (%p136) target = $region36
      $region35: #{pos_embed.1} parent=5 // pred_region
        %s139 = ssub.s32 %s11, 2
        // Predicated region
        $region37: #{pos_embed.1} parent=35 // pred_check
          %p140 = pneg %p61
        $region38: #{pos_embed.1} parent=35 // pred_check_branch
          %142 = sbr.rel (%p140) target = $region40
        $region39: #{pos_embed.1} parent=35 // pred_region
          %s143 = sand.u32 %s46, 1
          %s144 = scalar_lea.sflag [#allocation4], %s143
          %s145 = sand.u32 %s46, 1
          %s146 = smul.addr %s145, 16
          %s147 = scalar_lea.vmem [#allocation5], %s146
          %148 = dma.done %s144, 256
        $region40: #{pos_embed.1} parent=35 // pred_fallthru
          _
      $region36: #{pos_embed.1} parent=5 // pred_fallthru
        _
    $region6: #{pos_embed.1} parent=1 // loop_footer
      %s15 = sadd.s32 1, %s11
    $region7: #{pos_embed.1} parent=1 // loop_footer_branch
      %10 = sbr.rel target = $region3
    $region8: #{pos_embed.1} parent=1 // loop_exit
      _
    %149 = vsyncpa [#allocation3], 1
    %s150 = scalar_lea.sflag [#allocation3], 1
    %151 = vsyncpa %s150, 1
    %152 = vsyncpa [#allocation4], 1
    %s153 = scalar_lea.sflag [#allocation4], 1
    %154 = vsyncpa %s153, 1

</llo_original>
